<compile_context>
chip_gen: v7x
topology: tpu7x:2x2x1
jax: 0.10.0
libtpu: 0.0.40
codegen_flags: <defaults>
</compile_context>

<pallas_src>
import math
import jax
import jax.numpy as jnp
from jax import lax
from jax.experimental import pallas as pl
from jax.experimental.pallas import tpu as pltpu

EPS = 1e-5          # nn.LayerNorm default eps
MAX_ROW_BLOCK = 1024  # rows per grid step for large inputs (mem-bound roofline ~85%+)


# ---------------------------------------------------------- Pallas kernels ---
def _pe_kernel(x_ref, w_ref, b_ref, o_ref):
    # patch-matmul (bf16 inputs, f32 accumulation) + bias
    y = jnp.dot(x_ref[...].astype(jnp.bfloat16), w_ref[...],
                preferred_element_type=jnp.float32)
    o_ref[...] = y + b_ref[...]


def _pe_ln_kernel(x_ref, w_ref, b_ref, g_ref, bt_ref, o_ref):
    # fused patch-matmul + bias + LayerNorm (stats kept in f32)
    y = jnp.dot(x_ref[...].astype(jnp.bfloat16), w_ref[...],
                preferred_element_type=jnp.float32) + b_ref[...]
    mu = jnp.mean(y, axis=-1, keepdims=True)
    var = jnp.mean((y - mu) ** 2, axis=-1, keepdims=True)
    o_ref[...] = (y - mu) * lax.rsqrt(var + EPS) * g_ref[...] + bt_ref[...]


def patch_embed_pallas(xp2d, w_mat, bias, gamma=None, beta=None):
    """xp2d: (rows, K) patchified input; w_mat: (K, E) bf16; returns (rows, E) f32."""
    rows, K = xp2d.shape
    E = w_mat.shape[1]
    use_norm = gamma is not None

    # Largest row tile that fits comfortably; single step when the input is small.
    blk = rows if rows <= MAX_ROW_BLOCK else MAX_ROW_BLOCK
    nblk = -(-rows // blk)
    rows_p = nblk * blk
    if rows_p != rows:
        xp2d = jnp.pad(xp2d, ((0, rows_p - rows), (0, 0)))

    in_specs = [
        pl.BlockSpec((blk, K), lambda i: (i, 0)),
        pl.BlockSpec((K, E), lambda i: (0, 0)),
        pl.BlockSpec((1, E), lambda i: (0, 0)),
    ]
    args = [xp2d, w_mat, bias.reshape(1, E)]
    if use_norm:
        kernel = _pe_ln_kernel
        in_specs += [pl.BlockSpec((1, E), lambda i: (0, 0)),
                     pl.BlockSpec((1, E), lambda i: (0, 0))]
        args += [gamma.reshape(1, E), beta.reshape(1, E)]
    else:
        kernel = _pe_kernel

    out = pl.pallas_call(
        kernel,
        out_shape=jax.ShapeDtypeStruct((rows_p, E), jnp.float32),
        grid=(nblk,),
        in_specs=in_specs,
        out_specs=pl.BlockSpec((blk, E), lambda i: (i, 0)),
        compiler_params=pltpu.CompilerParams(
            dimension_semantics=("parallel",)),
    )(*args)
    return out[:rows] if rows_p != rows else out


# ----------------------------------------------------------- model forward ---
def patch_embed_forward(x, params, patch_size=(4, 4)):
    """x: (B, Cin, H, W) f32 -> (B, embed_dim, Wh, Ww) f32 (matches PyTorch PatchEmbed)."""
    B, Cin, H, W = x.shape
    ph, pw = patch_size

    # pad right / bottom to multiples of patch_size (same as F.pad in the reference)
    if W % pw != 0:
        x = jnp.pad(x, ((0, 0), (0, 0), (0, 0), (0, pw - W % pw)))
    if H % ph != 0:
        x = jnp.pad(x, ((0, 0), (0, 0), (0, ph - H % ph), (0, 0)))
    Hp, Wp = x.shape[2], x.shape[3]
    Wh, Ww = Hp // ph, Wp // pw

    # patchify: Conv2d(kernel=stride=patch) == matmul over (Cin, ph, pw) per patch
    xp = x.reshape(B, Cin, Wh, ph, Ww, pw)
    xp = xp.transpose(0, 2, 4, 1, 3, 5).reshape(B * Wh * Ww, Cin * ph * pw)

    out = patch_embed_pallas(xp, params["w_mat"], params["bias"],
                             params.get("gamma"), params.get("beta"))

    E = params["w_mat"].shape[1]
    out = out.reshape(B, Wh, Ww, E).transpose(0, 3, 1, 2)    # (B, E, Wh, Ww)
    return out


# ------------------------------------------------------------------- init ---
def init_params(key, in_chans, embed_dim, patch_size, use_norm=True):
    ph, pw = patch_size
    fan_in = in_chans * ph * pw
    k1, k2 = jax.random.split(key)
    # Conv2d weight layout: (embed_dim, in_chans, ph, pw)
    w = jax.random.normal(k1, (embed_dim, in_chans, ph, pw), jnp.float32)
    w = w * (1.0 / math.sqrt(fan_in))
    b = 0.02 * jax.random.normal(k2, (embed_dim,), jnp.float32)
    # fold into the (K, E) matmul layout once, host-side; bf16 for the MXU
    w_mat = w.reshape(embed_dim, fan_in).T.astype(jnp.bfloat16)     # (K, E)
    params = dict(w_mat=w_mat, bias=b)
    if use_norm:
        params["gamma"] = jnp.ones((embed_dim,), jnp.float32)
        params["beta"] = jnp.zeros((embed_dim,), jnp.float32)
    return params


# ------------------------------------------------------------------- main ---
if __name__ == "__main__":
    B, Cin, H, W = 2, 3, 18, 17          # non-multiples -> exercises the pad branch
    patch_size = (4, 4)
    embed_dim = 96

    key = jax.random.PRNGKey(0)
    kx, kp = jax.random.split(key)
    x = jax.random.normal(kx, (B, Cin, H, W), jnp.float32)
    params = init_params(kp, Cin, embed_dim, patch_size, use_norm=True)

    out = patch_embed_forward(x, params, patch_size)
    out = jax.block_until_ready(out)

    Wh, Ww = -(-H // patch_size[0]), -(-W // patch_size[1])
    assert out.shape == (B, embed_dim, Wh, Ww), out.shape
    assert bool(jnp.all(jnp.isfinite(out)))
    print("KERNEL_OK")
</pallas_src>

<mosaic_0001>
module attributes {stable_mosaic.version = 11 : i64} {
  func.func @_pe_ln_kernel(%arg0: i32, %arg1: memref<50x48xf32, #tpu.memory_space<vmem>>, %arg2: memref<48x96xbf16, #tpu.memory_space<vmem>>, %arg3: memref<1x96xf32, #tpu.memory_space<vmem>>, %arg4: memref<1x96xf32, #tpu.memory_space<vmem>>, %arg5: memref<1x96xf32, #tpu.memory_space<vmem>>, %arg6: memref<50x96xf32, #tpu.memory_space<vmem>>) attributes {dimension_semantics = [#tpu.dimension_semantics<parallel>], iteration_bounds = array<i64: 1>, scalar_prefetch = 0 : i64, scratch_operands = 0 : i64, tpu.core_type = #tpu.core_type<tc>, window_params = [{transform_indices = @transform_0, window_bounds = array<i64: 50, 48>}, {pipeline_mode = #tpu.pipeline_mode<synchronous>, transform_indices = @transform_1, window_bounds = array<i64: 48, 96>}, {pipeline_mode = #tpu.pipeline_mode<synchronous>, transform_indices = @transform_2, window_bounds = array<i64: 1, 96>}, {pipeline_mode = #tpu.pipeline_mode<synchronous>, transform_indices = @transform_3, window_bounds = array<i64: 1, 96>}, {pipeline_mode = #tpu.pipeline_mode<synchronous>, transform_indices = @transform_4, window_bounds = array<i64: 1, 96>}, {transform_indices = @transform_5, window_bounds = array<i64: 50, 96>}]} {
    %c0 = arith.constant 0 : index
    %c0_0 = arith.constant 0 : index
    %0 = vector.load %arg1[%c0, %c0_0] : memref<50x48xf32, #tpu.memory_space<vmem>>, vector<50x48xf32>
    %1 = arith.truncf %0 : vector<50x48xf32> to vector<50x48xbf16>
    %c0_1 = arith.constant 0 : index
    %c0_2 = arith.constant 0 : index
    %2 = vector.load %arg2[%c0_1, %c0_2] : memref<48x96xbf16, #tpu.memory_space<vmem>>, vector<48x96xbf16>
    %cst = arith.constant dense<0.000000e+00> : vector<50x96xf32>
    %3 = tpu.matmul %1, %2, %cst {dimension_numbers = #tpu.dot_dimension_numbers<[1], [0], [0], [1], [0, 0, 1, 1], [], []>} : vector<50x48xbf16>, vector<48x96xbf16>, vector<50x96xf32> -> vector<50x96xf32>
    %c0_3 = arith.constant 0 : index
    %c0_4 = arith.constant 0 : index
    %4 = vector.load %arg3[%c0_3, %c0_4] : memref<1x96xf32, #tpu.memory_space<vmem>>, vector<1x96xf32>
    %5 = vector.broadcast %4 : vector<1x96xf32> to vector<50x96xf32>
    %6 = arith.addf %3, %5 : vector<50x96xf32>
    %cst_5 = arith.constant dense<0.000000e+00> : vector<50xf32>
    %7 = vector.multi_reduction <add>, %6, %cst_5 [1] : vector<50x96xf32> to vector<50xf32>
    %8 = vector.shape_cast %7 : vector<50xf32> to vector<50x1xf32>
    %cst_6 = arith.constant 9.600000e+01 : f32
    %9 = vector.broadcast %cst_6 : f32 to vector<50x1xf32>
    %10 = arith.divf %8, %9 : vector<50x1xf32>
    %11 = vector.broadcast %10 : vector<50x1xf32> to vector<50x96xf32>
    %12 = arith.subf %6, %11 : vector<50x96xf32>
    %13 = arith.mulf %12, %12 : vector<50x96xf32>
    %cst_7 = arith.constant dense<0.000000e+00> : vector<50xf32>
    %14 = vector.multi_reduction <add>, %13, %cst_7 [1] : vector<50x96xf32> to vector<50xf32>
    %15 = vector.shape_cast %14 : vector<50xf32> to vector<50x1xf32>
    %cst_8 = arith.constant 9.600000e+01 : f32
    %16 = vector.broadcast %cst_8 : f32 to vector<50x1xf32>
    %17 = arith.divf %15, %16 : vector<50x1xf32>
    %18 = vector.broadcast %10 : vector<50x1xf32> to vector<50x96xf32>
    %19 = arith.subf %6, %18 : vector<50x96xf32>
    %cst_9 = arith.constant 9.99999974E-6 : f32
    %20 = vector.broadcast %cst_9 : f32 to vector<50x1xf32>
    %21 = arith.addf %17, %20 : vector<50x1xf32>
    %22 = math.rsqrt %21 : vector<50x1xf32>
    %23 = vector.broadcast %22 : vector<50x1xf32> to vector<50x96xf32>
    %24 = arith.mulf %19, %23 : vector<50x96xf32>
    %c0_10 = arith.constant 0 : index
    %c0_11 = arith.constant 0 : index
    %25 = vector.load %arg4[%c0_10, %c0_11] : memref<1x96xf32, #tpu.memory_space<vmem>>, vector<1x96xf32>
    %26 = vector.broadcast %25 : vector<1x96xf32> to vector<50x96xf32>
    %27 = arith.mulf %24, %26 : vector<50x96xf32>
    %c0_12 = arith.constant 0 : index
    %c0_13 = arith.constant 0 : index
    %28 = vector.load %arg5[%c0_12, %c0_13] : memref<1x96xf32, #tpu.memory_space<vmem>>, vector<1x96xf32>
    %29 = vector.broadcast %28 : vector<1x96xf32> to vector<50x96xf32>
    %30 = arith.addf %27, %29 : vector<50x96xf32>
    %c0_14 = arith.constant 0 : index
    %c0_15 = arith.constant 0 : index
    %31 = vector.load %arg6[%c0_14, %c0_15] : memref<50x96xf32, #tpu.memory_space<vmem>>, vector<50x96xf32>
    tpu.vector_store %arg6[%c0_14, %c0_15], %30 {strides = array<i32>} : memref<50x96xf32, #tpu.memory_space<vmem>>, vector<50x96xf32>,
    return
  }
  func.func @transform_0(%arg0: i32) -> (i32, i32) {
    %c0_i32 = arith.constant 0 : i32
    %c0_i32_0 = arith.constant 0 : i32
    return %arg0, %c0_i32 : i32, i32
  }
  func.func @transform_1(%arg0: i32) -> (i32, i32) {
    %c0_i32 = arith.constant 0 : i32
    %c0_i32_0 = arith.constant 0 : i32
    %c0_i32_1 = arith.constant 0 : i32
    return %c0_i32, %c0_i32_0 : i32, i32
  }
  func.func @transform_2(%arg0: i32) -> (i32, i32) {
    %c0_i32 = arith.constant 0 : i32
    %c0_i32_0 = arith.constant 0 : i32
    %c0_i32_1 = arith.constant 0 : i32
    return %c0_i32, %c0_i32_0 : i32, i32
  }
  func.func @transform_3(%arg0: i32) -> (i32, i32) {
    %c0_i32 = arith.constant 0 : i32
    %c0_i32_0 = arith.constant 0 : i32
    %c0_i32_1 = arith.constant 0 : i32
    return %c0_i32, %c0_i32_0 : i32, i32
  }
  func.func @transform_4(%arg0: i32) -> (i32, i32) {
    %c0_i32 = arith.constant 0 : i32
    %c0_i32_0 = arith.constant 0 : i32
    %c0_i32_1 = arith.constant 0 : i32
    return %c0_i32, %c0_i32_0 : i32, i32
  }
  func.func @transform_5(%arg0: i32) -> (i32, i32) {
    %c0_i32 = arith.constant 0 : i32
    %c0_i32_0 = arith.constant 0 : i32
    return %arg0, %c0_i32 : i32, i32
  }
}

</mosaic_0001>

<llo_original>
// kernel: tpu_custom_call.1
$region0: #{tpu_custom_call.1}
  #allocation0 [shape = 'u32[]', space=smem, size = 0x4, offset = 0x4, fixed_abs, tag = 'smem constant byte address 0x4 - core index']
  #allocation1 [shape = 'u32[144,128]{1,0:T(1,128)}', space=vmem, size = 0x12000, scoped, tag = 'internal scratch']
  %s0 = inlined_call_operand.vmem [shape: f32[50,48], index: 0, kind: input, shape index: {}]
  %s1 = inlined_call_operand.vmem [shape: bf16[48,96], index: 1, kind: input, shape index: {}]
  %s2 = inlined_call_operand.vmem [shape: f32[1,96], index: 2, kind: input, shape index: {}]
  %s3 = inlined_call_operand.vmem [shape: f32[1,96], index: 3, kind: input, shape index: {}]
  %s4 = inlined_call_operand.vmem [shape: f32[1,96], index: 4, kind: input, shape index: {}]
  %s5 = inlined_call_operand.hbm [shape: f32[50,96], index: 5, kind: output, shape index: {}]
  %s6 = sld [smem:[#allocation0]]
  $region30: #{tpu_custom_call.1} parent=0
    _
  %s8 = ssub.s32 1, %s6
  %s9 = scalar_select 0, %s8, %s6
  $region1: #{tpu_custom_call.1} parent=0
    #allocation2 [shape = 'u8[28672]{0}', space=vmem, size = 0x7000, scoped, tag = 'output window, operand 0, single buffered']
    #allocation3 [shape = 's32[1]{0}', space=sflag, size = 0x4, scoped, tag = 'scoped memory for tpu_custom_call.1']
    %10 = vsyncpa [#allocation3], 0
    // Predicated region
    $region2: #{tpu_custom_call.1} parent=1 // pred_check
      _
    $region3: #{tpu_custom_call.1} parent=1 // pred_check_branch
      %12 = sbr.rel (0) target = $region5
    $region4: #{tpu_custom_call.1} parent=1 // pred_region
      _
    $region5: #{tpu_custom_call.1} parent=1 // pred_fallthru
      _
    // Predicated region
    $region6: #{tpu_custom_call.1} parent=1 // pred_check
      _
    $region7: #{tpu_custom_call.1} parent=1 // pred_check_branch
      %14 = sbr.rel (0) target = $region9
    $region8: #{tpu_custom_call.1} parent=1 // pred_region
      _
    $region9: #{tpu_custom_call.1} parent=1 // pred_fallthru
      _
    // Predicated region
    $region10: #{tpu_custom_call.1} parent=1 // pred_check
      _
    $region11: #{tpu_custom_call.1} parent=1 // pred_check_branch
      %16 = sbr.rel (0) target = $region13
    $region12: #{tpu_custom_call.1} parent=1 // pred_region
      _
    $region13: #{tpu_custom_call.1} parent=1 // pred_fallthru
      _
    // Predicated region
    $region14: #{tpu_custom_call.1} parent=1 // pred_check
      _
    $region15: #{tpu_custom_call.1} parent=1 // pred_check_branch
      %18 = sbr.rel (0) target = $region17
    $region16: #{tpu_custom_call.1} parent=1 // pred_region
      _
    $region17: #{tpu_custom_call.1} parent=1 // pred_fallthru
      _
    // Predicated region
    $region18: #{tpu_custom_call.1} parent=1 // pred_check
      _
    $region19: #{tpu_custom_call.1} parent=1 // pred_check_branch
      %20 = sbr.rel (0) target = $region21
    $region20: #{tpu_custom_call.1} parent=1 // pred_region
      _
    $region21: #{tpu_custom_call.1} parent=1 // pred_fallthru
      _
    %v22 = vld [vmem:[%s0] sm:$0xff]
    %v23 = vld [vmem:[%s0 + $0x8] sm:$0xff]
    %v24 = vld [vmem:[%s0 + $0x10] sm:$0xff]
    %v25 = vld [vmem:[%s0 + $0x18] sm:$0xff]
    %v26 = vld [vmem:[%s0 + $0x20] sm:$0xff]
    %v27 = vld [vmem:[%s0 + $0x28] sm:$0xff]
    %v28 = vld [vmem:[%s0 + $0x30] sm:$0x3]
    %v29 = vpack.c.bf16 %v23, %v22
    %v30 = vpack.c.bf16 %v25, %v24
    %v31 = vpack.c.bf16 %v27, %v26
    %v32 = vpack.c.bf16 %v28, %v28
    %v33 = vld [vmem:[%s1] sm:$0xf]
    %v34 = vld [vmem:[%s1 + $0x4] sm:$0xf]
    %v35 = vld [vmem:[%s1 + $0x8] sm:$0xf]
    %v36 = vld [vmem:[%s1 + $0xc] sm:$0xf]
    %v37 = vld [vmem:[%s1 + $0x10] sm:$0xf]
    %v38 = vld [vmem:[%s1 + $0x14] sm:$0xf]
    %v39 = vld [vmem:[%s2] sm:$0x1]
    %v41 = vlaneseq
    %v42 = vshrl.u32 %v41, 7
    %v43 = vsub.s32 0, %v42
    %v44 = vrot.slane %v39, %v43
    %v52 = vunpack.c.l.b16 %v33
    %v53 = vunpack.c.l.b16 %v34
    %v54 = vunpack.c.l.b16 %v35
    %v55 = vunpack.c.l.b16 %v36
    %v56 = vunpack.c.l.b16 %v37
    %v57 = vunpack.c.l.b16 %v38
    %v58 = vpack.c.b16 %v53, %v52
    %v59 = vpack.c.b16 %v55, %v54
    %v60 = vpack.c.b16 %v57, %v56
    %vm64 = vcmask 392192
    %v66 = vsel %vm64, %v29, 0
    %v69 = vsel %vm64, %v30, 0
    %v72 = vsel %vm64, %v31, 0
    %v75 = vsel %vm64, %v32, 0
    %77 = vmatprep.subr.bf16.mxu0 0
    %78 = vmatpush1.bf16.msra.mxu0 %v58
    %79 = vmatprep.subr.bf16.mxu0 0
    %80 = vmatpush1.bf16.msra.mxu0 %v59
    %81 = vmatprep.subr.bf16.mxu0 0
    %82 = vmatpush1.bf16.msra.mxu0 %v60
    %83 = vmatprep.subr.bf16.mxu0 0
    %84 = vmatpush1.bf16.msra.mxu0 0
    %85 = vmatprep.subr.bf16.mxu0 0
    %86 = vmatpush1.bf16.msra.mxu0 0
    %87 = vmatprep.subr.bf16.mxu0 0
    %88 = vmatpush1.bf16.msra.mxu0 0
    %89 = vmatprep.subr.bf16.mxu0 0
    %90 = vmatpush1.bf16.msra.mxu0 0
    %91 = vmatprep.subr.bf16.mxu0 0
    %92 = vmatpush1.bf16.msra.mxu0 0
    %93 = vmatprep.subr.bf16.mxu0 0
    %94 = vmatpush1.bf16.msra.mxu0 0
    %95 = vmatprep.subr.bf16.mxu0 0
    %96 = vmatpush1.bf16.msra.mxu0 0
    %97 = vmatprep.subr.bf16.mxu0 0
    %98 = vmatpush1.bf16.msra.mxu0 0
    %99 = vmatprep.subr.bf16.mxu0 0
    %100 = vmatpush1.bf16.msra.mxu0 0
    %101 = vmatprep.subr.bf16.mxu0 0
    %102 = vmatpush1.bf16.msra.mxu0 0
    %103 = vmatprep.subr.bf16.mxu0 0
    %104 = vmatpush1.bf16.msra.mxu0 0
    %105 = vmatprep.subr.bf16.mxu0 0
    %106 = vmatpush1.bf16.msra.mxu0 0
    %107 = vmatprep.subr.bf16.mxu0 0
    %108 = vmatpush1.bf16.msra.mxu0 0
    %109 = vmatprep.mubr.bf16.mxu0 0
    %110 = vmatmul.mubr.bf16.gmra.mrb[0].mxu0 %v66
    %v111 = vpop.f32.mrb[0].mxu0
    %v112 = vadd.f32 %v44, %v111
    %v113 = vpop.f32.mrb[0].mxu0
    %v114 = vpop.f32.mrb[0].mxu0
    %v115 = vadd.f32 %v44, %v114
    %v116 = vpop.f32.mrb[0].mxu0
    %117 = vmatprep.mubr.bf16.mxu0 0
    %118 = vmatmul.mubr.bf16.gmra.mrb[0].mxu0 %v69
    %v119 = vpop.f32.mrb[0].mxu0
    %v120 = vadd.f32 %v44, %v119
    %v121 = vpop.f32.mrb[0].mxu0
    %v122 = vpop.f32.mrb[0].mxu0
    %v123 = vadd.f32 %v44, %v122
    %v124 = vpop.f32.mrb[0].mxu0
    %125 = vmatprep.mubr.bf16.mxu0 0
    %126 = vmatmul.mubr.bf16.gmra.mrb[0].mxu0 %v72
    %v127 = vpop.f32.mrb[0].mxu0
    %v128 = vadd.f32 %v44, %v127
    %v129 = vpop.f32.mrb[0].mxu0
    %v130 = vpop.f32.mrb[0].mxu0
    %v131 = vadd.f32 %v44, %v130
    %v132 = vpop.f32.mrb[0].mxu0
    %133 = vmatprep.mubr.bf16.mxu0 0
    %134 = vmatmul.mubr.bf16.gmra.mrb[0].mxu0 %v75
    %v135 = vpop.f32.mrb[0].mxu0
    %v136 = vadd.f32 %v44, %v135
    %v137 = vpop.f32.mrb[0].mxu0
    %v138 = vpop.f32.mrb[0].mxu0
    %v139 = vpop.f32.mrb[0].mxu0
    %140 = vdwg.mxu0
    %vm141 = vcmask 785408
    %v142 = vsel %vm141, %v112, 0.0
    %143 = vadd.xlane.f32.xlu0 %v142
    %v144 = vpop.xlane.xlu0 %143
    %v145 = vsel %vm141, %v115, 0.0
    %146 = vadd.xlane.f32.xlu0 %v145
    %v147 = vpop.xlane.xlu0 %146
    %v148 = vsel %vm141, %v120, 0.0
    %149 = vadd.xlane.f32.xlu0 %v148
    %v150 = vpop.xlane.xlu0 %149
    %v151 = vsel %vm141, %v123, 0.0
    %152 = vadd.xlane.f32.xlu0 %v151
    %v153 = vpop.xlane.xlu0 %152
    %v154 = vsel %vm141, %v128, 0.0
    %155 = vadd.xlane.f32.xlu0 %v154
    %v156 = vpop.xlane.xlu0 %155
    %v157 = vsel %vm141, %v131, 0.0
    %158 = vadd.xlane.f32.xlu0 %v157
    %v159 = vpop.xlane.xlu0 %158
    %vm160 = vcmask 779264
    %v161 = vsel %vm160, %v136, 0.0
    %162 = vadd.xlane.f32.xlu0 %v161
    %v163 = vpop.xlane.xlu0 %162
    %v164 = vrcp.pop 96.0
    %v165 = vmul.f32 %v144, %v164
    %v166 = vmul.f32 %v147, %v164
    %v167 = vmul.f32 %v150, %v164
    %v168 = vmul.f32 %v153, %v164
    %v169 = vmul.f32 %v156, %v164
    %v170 = vmul.f32 %v159, %v164
    %v171 = vmul.f32 %v163, %v164
    %v172 = vsub.f32 %v112, %v165
    %v173 = vsub.f32 %v115, %v166
    %v174 = vsub.f32 %v120, %v167
    %v175 = vsub.f32 %v123, %v168
    %v176 = vsub.f32 %v128, %v169
    %v177 = vsub.f32 %v131, %v170
    %v178 = vsub.f32 %v136, %v171
    %v179 = vmul.f32 %v172, %v172
    %v180 = vmul.f32 %v173, %v173
    %v181 = vmul.f32 %v174, %v174
    %v182 = vmul.f32 %v175, %v175
    %v183 = vmul.f32 %v176, %v176
    %v184 = vmul.f32 %v177, %v177
    %v185 = vmul.f32 %v178, %v178
    %v186 = vsel %vm141, %v179, 0.0
    %187 = vadd.xlane.f32.xlu0 %v186
    %v188 = vpop.xlane.xlu0 %187
    %v189 = vsel %vm141, %v180, 0.0
    %190 = vadd.xlane.f32.xlu0 %v189
    %v191 = vpop.xlane.xlu0 %190
    %v192 = vsel %vm141, %v181, 0.0
    %193 = vadd.xlane.f32.xlu0 %v192
    %v194 = vpop.xlane.xlu0 %193
    %v195 = vsel %vm141, %v182, 0.0
    %196 = vadd.xlane.f32.xlu0 %v195
    %v197 = vpop.xlane.xlu0 %196
    %v198 = vsel %vm141, %v183, 0.0
    %199 = vadd.xlane.f32.xlu0 %v198
    %v200 = vpop.xlane.xlu0 %199
    %v201 = vsel %vm141, %v184, 0.0
    %202 = vadd.xlane.f32.xlu0 %v201
    %v203 = vpop.xlane.xlu0 %202
    %v204 = vsel %vm160, %v185, 0.0
    %205 = vadd.xlane.f32.xlu0 %v204
    %v206 = vpop.xlane.xlu0 %205
    %v207 = vmul.f32 %v188, %v164
    %v208 = vmul.f32 %v191, %v164
    %v209 = vmul.f32 %v194, %v164
    %v210 = vmul.f32 %v197, %v164
    %v211 = vmul.f32 %v200, %v164
    %v212 = vmul.f32 %v203, %v164
    %v213 = vmul.f32 %v206, %v164
    %v214 = vadd.f32 %v207, 1e-05
    %v215 = vadd.f32 %v208, 1e-05
    %v216 = vadd.f32 %v209, 1e-05
    %v217 = vadd.f32 %v210, 1e-05
    %v218 = vadd.f32 %v211, 1e-05
    %v219 = vadd.f32 %v212, 1e-05
    %v220 = vadd.f32 %v213, 1e-05
    %v221 = vrsqrt.pop %v214
    %v222 = vrsqrt.pop %v215
    %v223 = vrsqrt.pop %v216
    %v224 = vrsqrt.pop %v217
    %v225 = vrsqrt.pop %v218
    %v226 = vrsqrt.pop %v219
    %v227 = vrsqrt.pop %v220
    %v228 = vmul.f32 %v172, %v221
    %v229 = vmul.f32 %v173, %v222
    %v230 = vmul.f32 %v174, %v223
    %v231 = vmul.f32 %v175, %v224
    %v232 = vmul.f32 %v176, %v225
    %v233 = vmul.f32 %v177, %v226
    %v234 = vmul.f32 %v178, %v227
    %v235 = vld [vmem:[%s3] sm:$0x1]
    %v237 = vlaneseq
    %v238 = vshrl.u32 %v237, 7
    %v239 = vsub.s32 0, %v238
    %v240 = vrot.slane %v235, %v239
    %v242 = vmul.f32 %v228, %v240
    %v243 = vmul.f32 %v229, %v240
    %v244 = vmul.f32 %v230, %v240
    %v245 = vmul.f32 %v231, %v240
    %v246 = vmul.f32 %v232, %v240
    %v247 = vmul.f32 %v233, %v240
    %v248 = vmul.f32 %v234, %v240
    %v249 = vld [vmem:[%s4] sm:$0x1]
    %v251 = vlaneseq
    %v252 = vshrl.u32 %v251, 7
    %v253 = vsub.s32 0, %v252
    %v254 = vrot.slane %v249, %v253
    %v256 = vadd.f32 %v242, %v254
    %v257 = vadd.f32 %v243, %v254
    %v258 = vadd.f32 %v244, %v254
    %v259 = vadd.f32 %v245, %v254
    %v260 = vadd.f32 %v246, %v254
    %v261 = vadd.f32 %v247, %v254
    %v262 = vadd.f32 %v248, %v254
    %263 = vst.msk [vmem:[#allocation2] sm:$0xff] %vm141, %v256
    %264 = vst.msk [vmem:[#allocation2 + $0x8] sm:$0xff] %vm141, %v257
    %265 = vst.msk [vmem:[#allocation2 + $0x10] sm:$0xff] %vm141, %v258
    %266 = vst.msk [vmem:[#allocation2 + $0x18] sm:$0xff] %vm141, %v259
    %267 = vst.msk [vmem:[#allocation2 + $0x20] sm:$0xff] %vm141, %v260
    %268 = vst.msk [vmem:[#allocation2 + $0x28] sm:$0xff] %vm141, %v261
    %269 = vst.msk [vmem:[#allocation2 + $0x30] sm:$0x3] %vm160, %v262
    // Predicated region
    $region22: #{tpu_custom_call.1} parent=1 // pred_check
      _
    $region23: #{tpu_custom_call.1} parent=1 // pred_check_branch
      %271 = sbr.rel (0) target = $region25
    $region24: #{tpu_custom_call.1} parent=1 // pred_region
      %s273 = ssub.s32 896, 896
      %274 = vsyncadd [#allocation3], %s273
      %s275 = sshll.u32 [#allocation2], 4
      %s276 = int_to_ptr.vmem [resolvable:$true] %s275
      %281 = dma.vmem_to_hbm [thread:$0]  %s276, 896, %s5, [#allocation3], 128, 128, 8
    $region25: #{tpu_custom_call.1} parent=1 // pred_fallthru
      _
    // Predicated region
    $region26: #{tpu_custom_call.1} parent=1 // pred_check
      _
    $region27: #{tpu_custom_call.1} parent=1 // pred_check_branch
      %283 = sbr.rel (0) target = $region29
    $region28: #{tpu_custom_call.1} parent=1 // pred_region
      %284 = dma.done [#allocation3], 896
    $region29: #{tpu_custom_call.1} parent=1 // pred_fallthru
      _
    %285 = vsyncpa [#allocation3], 1

</llo_original>
